<compile_context>
chip_gen: v7x
topology: tpu7x:2x2x1
jax: 0.10.0
libtpu: 0.0.40
codegen_flags: <defaults>
</compile_context>

<pallas_src>
import jax
import jax.numpy as jnp
import numpy as np
from jax import lax
from jax.experimental import pallas as pl
from jax.experimental.pallas import tpu as pltpu

BN_EPS = 1e-3
LANE = 128
SENTINEL = -(1 << 20)      # position sentinel for padded lanes -> all taps masked


def _round_up(x, m):
    return (x + m - 1) // m * m


def _vmem_capacity_bytes():
    """Physical VMEM of the current TPU generation (conservative fallback)."""
    try:
        return int(pltpu.get_tpu_info().vmem_capacity_bytes)
    except Exception:
        return 64 * 1024 * 1024          # v7x per-TensorCore VMEM


def _choose_tiling(mtot, halof, cmid, cout, K, esz, comb_esz):
    """Generation-aware lane tile TM, padded extent Mp and vmem limit."""
    phys = _vmem_capacity_bytes()
    tm = 4096 if phys >= (100 << 20) else 2048     # v5e/v6e: 128 MiB, v7x: 64 MiB
    vmem_limit = min(max(int(phys * 0.5), 32 << 20), 96 << 20)

    def usage(t):
        db = 2                                          # double buffering
        return (db * (3 * cmid * t * esz + 2 * t * 4)   # out1 views + y/x pos
                + db * (cout * t * comb_esz + cout * 2 * 4)   # comb + stats
                + 2 * cout * K * esz                    # combined weight
                + cmid * 3 * t * esz + K * t * esz      # window + panel scratch
                + (cout + K) * t * 4)                   # headroom (spills etc.)

    while tm > 512 and usage(tm) > vmem_limit // 2:
        tm //= 2
    tm = min(tm, _round_up(max(mtot, 1), LANE))
    tm = max(tm, _round_up(max(halof, 1), LANE))        # halo must fit one tile
    mp = _round_up(mtot, tm)
    return tm, mp, vmem_limit


def _spatial_tile(s_p, cap=16384):
    """Largest multiple-of-128 divisor of the padded per-image spatial extent."""
    k = s_p // LANE
    best, d = 1, 1
    while d * d <= k:
        if k % d == 0:
            for cand in (d, k // d):
                if cand * LANE <= cap and cand > best:
                    best = cand
        d += 1
    return best * LANE


# ----------------------------- Pallas kernels --------------------------------

def _matmul_kernel(w_ref, x_ref, o_ref):
    """(cout, K) @ (K, TM) -> (cout, TM); f32 MXU accumulation, lane-dense out."""
    o_ref[...] = jnp.dot(w_ref[...], x_ref[...],
                         preferred_element_type=jnp.float32).astype(o_ref.dtype)


def _tiled_matmul(w, x, tm, out_dtype, vmem_limit):
    cout, K = w.shape
    _, mp = x.shape
    return pl.pallas_call(
        _matmul_kernel,
        out_shape=jax.ShapeDtypeStruct((cout, mp), out_dtype),
        grid=(mp // tm,),
        in_specs=[pl.BlockSpec((cout, K), lambda i: (0, 0)),
                  pl.BlockSpec((K, tm), lambda i: (0, i))],
        out_specs=pl.BlockSpec((cout, tm), lambda i: (0, i)),
        compiler_params=pltpu.CompilerParams(
            dimension_semantics=("parallel",),
            vmem_limit_bytes=vmem_limit),
    )(w, x)


def _dilated_comb_stats(w2t, out1_win, ypos, xpos, taps, tm, ho, wo,
                        comb_dtype, vmem_limit):
    """Fused 5-dilation conv with IN-KERNEL tap gather + per-tile BN stats.

    out1_win : (cmid, Mp + 2*TM) zero-haloed, per-image-padded flat out1.
    Three overlapping block views (i, i+1, i+2) give the kernel a contiguous
    window [i*TM, i*TM + 3*TM); each live tap is a static lane shift of that
    window masked by the precomputed (y, x) validity test.
    """
    cout, K = w2t.shape
    cmid = out1_win.shape[0]
    mp = out1_win.shape[1] - 2 * tm
    nt = mp // tm
    mm_dtype = w2t.dtype

    def kernel(w_ref, prev_ref, cur_ref, nxt_ref, y_ref, x_ref,
               comb_ref, stats_ref, win_ref, panel_ref):
        # Stitch the three TM-wide views into one contiguous VMEM window.
        win_ref[:, 0:tm] = prev_ref[...]
        win_ref[:, tm:2 * tm] = cur_ref[...]
        win_ref[:, 2 * tm:3 * tm] = nxt_ref[...]
        y = y_ref[...]                                   # (1, TM) int32
        x = x_ref[...]
        for t, (dy, dx) in enumerate(taps):              # unrolled, static
            off = dy * wo + dx                           # constant lane shift
            sl = win_ref[:, tm + off: tm + off + tm]     # (cmid, TM)
            valid = ((y + dy >= 0) & (y + dy < ho) &
                     (x + dx >= 0) & (x + dx < wo))      # (1, TM)
            panel_ref[t * cmid:(t + 1) * cmid, :] = jnp.where(
                valid, sl, jnp.zeros_like(sl))
        comb = jnp.dot(w_ref[...], panel_ref[...],
                       preferred_element_type=jnp.float32)   # (cout, TM) f32
        comb_ref[...] = comb.astype(comb_ref.dtype)
        # BN partial statistics from the f32 accumulator; single store.
        s1 = jnp.sum(comb, axis=1, keepdims=True)
        s2 = jnp.sum(comb * comb, axis=1, keepdims=True)
        stats_ref[0, :, :] = jnp.concatenate([s1, s2], axis=1)

    return pl.pallas_call(
        kernel,
        out_shape=(jax.ShapeDtypeStruct((cout, mp), comb_dtype),
                   jax.ShapeDtypeStruct((nt, cout, 2), jnp.float32)),
        grid=(nt,),
        in_specs=[pl.BlockSpec((cout, K), lambda i: (0, 0)),
                  pl.BlockSpec((cmid, tm), lambda i: (0, i)),
                  pl.BlockSpec((cmid, tm), lambda i: (0, i + 1)),
                  pl.BlockSpec((cmid, tm), lambda i: (0, i + 2)),
                  pl.BlockSpec((1, tm), lambda i: (0, i)),
                  pl.BlockSpec((1, tm), lambda i: (0, i))],
        out_specs=(pl.BlockSpec((cout, tm), lambda i: (0, i)),
                   pl.BlockSpec((1, cout, 2), lambda i: (i, 0, 0))),
        scratch_shapes=[pltpu.VMEM((cmid, 3 * tm), mm_dtype),   # stitched window
                        pltpu.VMEM((K, tm), mm_dtype)],         # gathered panel
        compiler_params=pltpu.CompilerParams(
            dimension_semantics=("parallel",),
            vmem_limit_bytes=vmem_limit),
    )(w2t, out1_win, out1_win, out1_win, ypos, xpos)


def _bn_prelu_nchw(comb, scale, shift, alpha, N, s_p, ts, vmem_limit):
    """y = comb*scale + shift, then per-channel PReLU, written as (N, C, S)."""
    cout = comb.shape[0]
    bpi = s_p // ts

    def kernel(c_ref, sc_ref, sh_ref, al_ref, o_ref):
        yv = c_ref[...].astype(jnp.float32) * sc_ref[...] + sh_ref[...]
        o_ref[0] = jnp.where(yv >= 0.0, yv, al_ref[...] * yv)

    return pl.pallas_call(
        kernel,
        out_shape=jax.ShapeDtypeStruct((N, cout, s_p), jnp.float32),
        grid=(N, bpi),
        in_specs=[pl.BlockSpec((cout, ts), lambda b, j: (0, b * bpi + j)),
                  pl.BlockSpec((cout, 1), lambda b, j: (0, 0)),
                  pl.BlockSpec((cout, 1), lambda b, j: (0, 0)),
                  pl.BlockSpec((cout, 1), lambda b, j: (0, 0))],
        out_specs=pl.BlockSpec((1, cout, ts), lambda b, j: (b, 0, j)),
        compiler_params=pltpu.CompilerParams(
            dimension_semantics=("parallel", "parallel"),
            vmem_limit_bytes=vmem_limit),
    )(comb, scale, shift, alpha)


# ----------------------------- wrapper glue -----------------------------------

def _c1_im2col_t(x_nhwc, Ho, Wo, s_p, mp, dtype):
    """Transposed im2col (9*cin, Mp) for the 3x3/stride-2/pad-1 conv; taps are
    cast to the matmul dtype before stacking so no f32 slab is materialized."""
    N, H, W, cin = x_nhwc.shape
    xpad = jnp.pad(x_nhwc, ((0, 0), (1, 1), (1, 1), (0, 0))).astype(dtype)
    taps = []
    for kh in range(3):
        for kw in range(3):
            taps.append(xpad[:, kh::2, kw::2, :][:, :Ho, :Wo, :])  # (N,Ho,Wo,cin)
    a = jnp.stack(taps, axis=0)                  # (9, N, Ho, Wo, cin)
    a = jnp.moveaxis(a, -1, 1)                   # (9, cin, N, Ho, Wo)
    a = a.reshape(9 * cin, N, Ho * Wo)
    a = jnp.pad(a, ((0, 0), (0, 0), (0, s_p - Ho * Wo)))   # per-image pad
    a = a.reshape(9 * cin, N * s_p)
    return jnp.pad(a, ((0, 0), (0, mp - N * s_p)))


def _build_taps_weight(params, Ho, Wo, n1, n, nOut):
    """Live dilated taps (dead halo-only taps skipped) and the combined
    (K, nOut) weight folding the [d1|add1..add4] concat + prefix adds."""
    dws = [(1, params['wd1']), (2, params['wd2']), (4, params['wd4']),
           (8, params['wd8']), (16, params['wd16'])]
    taps, w_rows = [], []
    for idx, (d, Wt) in enumerate(dws):          # Wt: (3,3,cmid,cd) HWIO
        for kh in range(3):
            for kw in range(3):
                dy, dx = (kh - 1) * d, (kw - 1) * d
                if abs(dy) >= Ho or abs(dx) >= Wo:
                    continue                     # tap reads only the zero halo
                taps.append((dy, dx))
                wblk = Wt[kh, kw].astype(jnp.float32)        # (cmid, cd)
                full = jnp.zeros((Wt.shape[2], nOut), jnp.float32)
                if idx == 0:                     # d1 -> first n1 channels
                    full = full.at[:, 0:n1].set(wblk)
                else:                            # d_k -> add_k .. add_4
                    start = n1 + (idx - 1) * n
                    reps = (nOut - start) // n
                    full = full.at[:, start:].set(jnp.tile(wblk, (1, reps)))
                w_rows.append(full)
    return taps, jnp.concatenate(w_rows, axis=0)             # (K, nOut)


def _positions(N, Ho, Wo, s_p, mp):
    """Per-lane (y, x) int32 streams; padded lanes get a sentinel so every tap
    is masked there (-> comb = 0, BN stats unaffected)."""
    s = jnp.arange(s_p, dtype=jnp.int32)
    in_img = s < Ho * Wo
    y = jnp.where(in_img, s // Wo, SENTINEL)
    x = jnp.where(in_img, s % Wo, SENTINEL)
    y = jnp.tile(y, (N,))
    x = jnp.tile(x, (N,))
    pad = mp - N * s_p
    y = jnp.pad(y, ((0, pad),), constant_values=SENTINEL)
    x = jnp.pad(x, ((0, pad),), constant_values=SENTINEL)
    return y.reshape(1, mp), x.reshape(1, mp)


def downsampler_b(x_nchw, params, *, use_bf16=True):
    """Forward pass of DownSamplerB. Input/output are NCHW like PyTorch."""
    mm_dtype = jnp.bfloat16 if use_bf16 else jnp.float32
    comb_dtype = mm_dtype
    esz = 2 if use_bf16 else 4

    x = jnp.transpose(x_nchw, (0, 2, 3, 1)).astype(jnp.float32)     # NHWC
    N, H, W, cin = x.shape
    Ho, Wo = (H - 1) // 2 + 1, (W - 1) // 2 + 1
    hw = Ho * Wo
    n = params['wd2'].shape[-1]
    n1 = params['wd1'].shape[-1]
    nOut = n1 + 4 * n
    cmid = n

    taps, w2 = _build_taps_weight(params, Ho, Wo, n1, n, nOut)      # (K, nOut)
    K = len(taps) * cmid
    halof = max(abs(dy * Wo + dx) for dy, dx in taps)

    s_p = _round_up(hw, LANE)                    # per-image padded spatial extent
    mtot = N * s_p
    tm, mp, vmem_limit = _choose_tiling(mtot, halof, cmid, nOut, K, esz, esz)

    # ---- stage 1: 3x3 stride-2 conv as one (n, 9*cin) x (9*cin, TM) matmul ----
    a1 = _c1_im2col_t(x, Ho, Wo, s_p, mp, mm_dtype)                 # (9cin, Mp)
    w1 = params['wc1'].reshape(9 * cin, n).T.astype(mm_dtype)       # (n, 9cin)
    out1 = _tiled_matmul(w1, a1, tm, mm_dtype, vmem_limit)          # (cmid, Mp)

    # ---- stage 2: fused dilated block, in-kernel tap gather, BN partial stats
    out1_win = jnp.pad(out1, ((0, 0), (tm, tm)))                    # zero halo
    ypos, xpos = _positions(N, Ho, Wo, s_p, mp)                     # (1, Mp) i32
    w2t = w2.T.astype(mm_dtype)                                     # (nOut, K)
    comb, stats = _dilated_comb_stats(w2t, out1_win, ypos, xpos, taps,
                                      tm, Ho, Wo, comb_dtype, vmem_limit)

    # ---- BN batch statistics (training-mode BatchNorm2d) ---------------------
    tot = jnp.sum(stats, axis=0)                                    # (nOut, 2)
    count = float(N * hw)
    mean = tot[:, 0] / count
    var = jnp.maximum(tot[:, 1] / count - mean * mean, 0.0)         # clamp
    gamma = params['gamma'].reshape(nOut)
    beta = params['beta'].reshape(nOut)
    alpha = params['alpha'].reshape(nOut)
    scale = gamma * lax.rsqrt(var + BN_EPS)
    shift = beta - mean * scale

    # ---- stage 3: BN + PReLU, written directly in NCHW layout ----------------
    ts = _spatial_tile(s_p)
    out3 = _bn_prelu_nchw(comb, scale.reshape(nOut, 1), shift.reshape(nOut, 1),
                          alpha.reshape(nOut, 1), N, s_p, ts, vmem_limit)
    if s_p != hw:
        out3 = out3[:, :, :hw]
    return out3.reshape(N, nOut, Ho, Wo)                            # NCHW


# ------------------------------ reference -------------------------------------

def _ref_forward(x_nchw, params):
    """Pure-JAX f32 reference mirroring the PyTorch module (training-mode BN)."""
    x = jnp.transpose(x_nchw, (0, 2, 3, 1)).astype(jnp.float32)

    def conv(inp, w, stride, d):
        p = d
        return lax.conv_general_dilated(
            inp, w, (stride, stride), [(p, p), (p, p)],
            rhs_dilation=(d, d),
            dimension_numbers=('NHWC', 'HWIO', 'NHWC'))

    out1 = conv(x, params['wc1'], 2, 1)
    d1 = conv(out1, params['wd1'], 1, 1)
    d2 = conv(out1, params['wd2'], 1, 2)
    d4 = conv(out1, params['wd4'], 1, 4)
    d8 = conv(out1, params['wd8'], 1, 8)
    d16 = conv(out1, params['wd16'], 1, 16)
    add1 = d2
    add2 = add1 + d4
    add3 = add2 + d8
    add4 = add3 + d16
    comb = jnp.concatenate([d1, add1, add2, add3, add4], axis=-1)
    mean = comb.mean((0, 1, 2))
    var = ((comb - mean) ** 2).mean((0, 1, 2))
    y = (comb - mean) / jnp.sqrt(var + BN_EPS) * params['gamma'][0] + params['beta'][0]
    y = jnp.where(y >= 0, y, params['alpha'][0] * y)
    return jnp.transpose(y, (0, 3, 1, 2))


if __name__ == "__main__":
    nIn, nOut = 4, 20
    n = nOut // 5
    n1 = nOut - 4 * n

    key = jax.random.PRNGKey(0)
    ks = jax.random.split(key, 7)
    params = {
        'wc1': jax.random.normal(ks[0], (3, 3, nIn, n), jnp.float32) * 0.3,
        'wd1': jax.random.normal(ks[1], (3, 3, n, n1), jnp.float32) * 0.3,
        'wd2': jax.random.normal(ks[2], (3, 3, n, n), jnp.float32) * 0.3,
        'wd4': jax.random.normal(ks[3], (3, 3, n, n), jnp.float32) * 0.3,
        'wd8': jax.random.normal(ks[4], (3, 3, n, n), jnp.float32) * 0.3,
        'wd16': jax.random.normal(ks[5], (3, 3, n, n), jnp.float32) * 0.3,
        'gamma': jnp.ones((1, nOut), jnp.float32),       # BN weight init
        'beta': jnp.zeros((1, nOut), jnp.float32),       # BN bias init
        'alpha': jnp.full((1, nOut), 0.25, jnp.float32), # PReLU init
    }

    x = jax.random.normal(ks[6], (2, nIn, 16, 16), jnp.float32)   # NCHW

    ref = _ref_forward(x, params)

    # 1) f32 MXU path: tight validation of indexing / gather / BN structure.
    out_f32 = jax.block_until_ready(downsampler_b(x, params, use_bf16=False))
    np.testing.assert_allclose(np.asarray(out_f32), np.asarray(ref),
                               rtol=1e-4, atol=1e-4)

    # 2) bf16 streaming path (f32 accumulation) — the performance configuration.
    out_bf16 = jax.block_until_ready(downsampler_b(x, params, use_bf16=True))
    np.testing.assert_allclose(np.asarray(out_bf16), np.asarray(ref),
                               rtol=5e-2, atol=1e-1)

    print("KERNEL_OK")
</pallas_src>

<mosaic_0001>
module attributes {stable_mosaic.version = 11 : i64} {
  func.func @_matmul_kernel(%arg0: i32, %arg1: memref<4x36xf32, #tpu.memory_space<vmem>>, %arg2: memref<36x256xf32, #tpu.memory_space<vmem>>, %arg3: memref<4x256xf32, #tpu.memory_space<vmem>>) attributes {dimension_semantics = [#tpu.dimension_semantics<parallel>], iteration_bounds = array<i64: 1>, scalar_prefetch = 0 : i64, scratch_operands = 0 : i64, tpu.core_type = #tpu.core_type<tc>, window_params = [{pipeline_mode = #tpu.pipeline_mode<synchronous>, transform_indices = @transform_0, window_bounds = array<i64: 4, 36>}, {transform_indices = @transform_1, window_bounds = array<i64: 36, 256>}, {transform_indices = @transform_2, window_bounds = array<i64: 4, 256>}]} {
    %c0 = arith.constant 0 : index
    %c0_0 = arith.constant 0 : index
    %0 = vector.load %arg1[%c0, %c0_0] : memref<4x36xf32, #tpu.memory_space<vmem>>, vector<4x36xf32>
    %c0_1 = arith.constant 0 : index
    %c0_2 = arith.constant 0 : index
    %1 = vector.load %arg2[%c0_1, %c0_2] : memref<36x256xf32, #tpu.memory_space<vmem>>, vector<36x256xf32>
    %cst = arith.constant dense<0.000000e+00> : vector<4x256xf32>
    %2 = tpu.matmul %0, %1, %cst {dimension_numbers = #tpu.dot_dimension_numbers<[1], [0], [0], [1], [0, 0, 1, 1], [], []>} : vector<4x36xf32>, vector<36x256xf32>, vector<4x256xf32> -> vector<4x256xf32>
    %c0_3 = arith.constant 0 : index
    %c0_4 = arith.constant 0 : index
    %3 = vector.load %arg3[%c0_3, %c0_4] : memref<4x256xf32, #tpu.memory_space<vmem>>, vector<4x256xf32>
    tpu.vector_store %arg3[%c0_3, %c0_4], %2 {strides = array<i32>} : memref<4x256xf32, #tpu.memory_space<vmem>>, vector<4x256xf32>,
    return
  }
  func.func @transform_0(%arg0: i32) -> (i32, i32) {
    %c0_i32 = arith.constant 0 : i32
    %c0_i32_0 = arith.constant 0 : i32
    %c0_i32_1 = arith.constant 0 : i32
    return %c0_i32, %c0_i32_0 : i32, i32
  }
  func.func @transform_1(%arg0: i32) -> (i32, i32) {
    %c0_i32 = arith.constant 0 : i32
    %c0_i32_0 = arith.constant 0 : i32
    return %c0_i32, %arg0 : i32, i32
  }
  func.func @transform_2(%arg0: i32) -> (i32, i32) {
    %c0_i32 = arith.constant 0 : i32
    %c0_i32_0 = arith.constant 0 : i32
    return %c0_i32, %arg0 : i32, i32
  }
}

</mosaic_0001>

<llo_original>
// kernel: tpu_custom_call.1
$region0: #{tpu_custom_call.1}
  #allocation0 [shape = 'u32[]', space=smem, size = 0x4, offset = 0x4, fixed_abs, tag = 'smem constant byte address 0x4 - core index']
  #allocation1 [shape = 'u32[144,128]{1,0:T(1,128)}', space=vmem, size = 0x12000, scoped, tag = 'internal scratch']
  %s0 = inlined_call_operand.hbm [shape: f32[4,36], index: 0, kind: input, shape index: {}]
  %s1 = inlined_call_operand.hbm [shape: f32[36,256], index: 1, kind: input, shape index: {}]
  %s2 = inlined_call_operand.hbm [shape: f32[4,256], index: 2, kind: output, shape index: {}]
  %s3 = sld [smem:[#allocation0]]
  $region26: #{tpu_custom_call.1} parent=0
    _
  %s5 = ssub.s32 1, %s3
  %s6 = scalar_select 0, %s5, %s3
  $region1: #{tpu_custom_call.1} parent=0
    #allocation2 [shape = 'u8[2048]{0}', space=vmem, size = 0x800, scoped, tag = 'input window, operand 0, single buffered']
    #allocation3 [shape = 's32[1]{0}', space=sflag, size = 0x4, scoped, tag = 'scoped memory for tpu_custom_call.1']
    #allocation4 [shape = 's32[1]{0}', space=sflag, size = 0x4, scoped, tag = 'scoped memory for tpu_custom_call.1']
    #allocation5 [shape = 'u8[40960]{0}', space=vmem, size = 0xa000, scoped, tag = 'input window, operand 1, single buffered']
    #allocation6 [shape = 's32[1]{0}', space=sflag, size = 0x4, scoped, tag = 'scoped memory for tpu_custom_call.1']
    #allocation7 [shape = 'u8[4096]{0}', space=vmem, size = 0x1000, scoped, tag = 'output window, operand 0, single buffered']
    %7 = vsyncpa [#allocation3], 0
    %8 = vsyncpa [#allocation6], 0
    %9 = vsyncpa [#allocation4], 0
    // Predicated region
    $region2: #{tpu_custom_call.1} parent=1 // pred_check
      _
    $region3: #{tpu_custom_call.1} parent=1 // pred_check_branch
      %11 = sbr.rel (0) target = $region5
    $region4: #{tpu_custom_call.1} parent=1 // pred_region
      %s13 = ssub.s32 64, 64
      %14 = vsyncadd [#allocation3], %s13
      %s16 = sshll.u32 [#allocation2], 4
      %s17 = int_to_ptr.vmem [resolvable:$true] %s16
      %19 = dma.hbm_to_vmem [thread:$0]  %s0, 64, %s17, [#allocation3]
    $region5: #{tpu_custom_call.1} parent=1 // pred_fallthru
      _
    // Predicated region
    $region6: #{tpu_custom_call.1} parent=1 // pred_check
      _
    $region7: #{tpu_custom_call.1} parent=1 // pred_check_branch
      %21 = sbr.rel (0) target = $region9
    $region8: #{tpu_custom_call.1} parent=1 // pred_region
      %s23 = ssub.s32 1280, 1280
      %24 = vsyncadd [#allocation6], %s23
      %s25 = sshll.u32 [#allocation5], 4
      %s26 = int_to_ptr.vmem [resolvable:$true] %s25
      %31 = dma.hbm_to_vmem [thread:$0]  %s1, 1280, %s26, [#allocation6], 256, 256, 16
    $region9: #{tpu_custom_call.1} parent=1 // pred_fallthru
      _
    // Predicated region
    $region10: #{tpu_custom_call.1} parent=1 // pred_check
      _
    $region11: #{tpu_custom_call.1} parent=1 // pred_check_branch
      %33 = sbr.rel (0) target = $region13
    $region12: #{tpu_custom_call.1} parent=1 // pred_region
      %34 = dma.done [#allocation3], 64
    $region13: #{tpu_custom_call.1} parent=1 // pred_fallthru
      _
    // Predicated region
    $region14: #{tpu_custom_call.1} parent=1 // pred_check
      _
    $region15: #{tpu_custom_call.1} parent=1 // pred_check_branch
      %36 = sbr.rel (0) target = $region17
    $region16: #{tpu_custom_call.1} parent=1 // pred_region
      %37 = dma.done [#allocation6], 1280
    $region17: #{tpu_custom_call.1} parent=1 // pred_fallthru
      _
    %v38 = vld [vmem:[#allocation2] sm:$0xf]
    %v39 = vld [vmem:[#allocation5] sm:$0xff]
    %v40 = vld [vmem:[#allocation5 + $0x8] sm:$0xff]
    %v41 = vld [vmem:[#allocation5 + $0x10] sm:$0xff]
    %v42 = vld [vmem:[#allocation5 + $0x18] sm:$0xff]
    %v43 = vld [vmem:[#allocation5 + $0x20] sm:$0xff]
    %v44 = vld [vmem:[#allocation5 + $0x28] sm:$0xff]
    %v45 = vld [vmem:[#allocation5 + $0x30] sm:$0xff]
    %v46 = vld [vmem:[#allocation5 + $0x38] sm:$0xff]
    %v47 = vld [vmem:[#allocation5 + $0x40] sm:$0xf]
    %v48 = vld [vmem:[#allocation5 + $0x48] sm:$0xf]
    %vm49 = vcmask 293888
    %v51 = vsel %vm49, %v38, 0
    %vm53 = vcmask 1043456
    %v55 = vsel %vm53, %v47, 0
    %v58 = vsel %vm53, %v48, 0
    %60 = vmatprep.subr.mxu0 %v40
    %61 = vmatpush1.msra.mxu0 %v39
    %62 = vmatprep.subr.mxu0 %v42
    %63 = vmatpush1.msra.mxu0 %v41
    %64 = vmatprep.subr.mxu0 %v44
    %65 = vmatpush1.msra.mxu0 %v43
    %66 = vmatprep.subr.mxu0 %v46
    %67 = vmatpush1.msra.mxu0 %v45
    %68 = vmatprep.subr.mxu0 %v58
    %69 = vmatpush1.msra.mxu0 %v55
    %70 = vmatprep.subr.mxu0 0.0
    %71 = vmatpush1.msra.mxu0 0.0
    %72 = vmatprep.subr.mxu0 0.0
    %73 = vmatpush1.msra.mxu0 0.0
    %74 = vmatprep.subr.mxu0 0.0
    %75 = vmatpush1.msra.mxu0 0.0
    %76 = vmatprep.subr.mxu0 0.0
    %77 = vmatpush1.msra.mxu0 0.0
    %78 = vmatprep.subr.mxu0 0.0
    %79 = vmatpush1.msra.mxu0 0.0
    %80 = vmatprep.subr.mxu0 0.0
    %81 = vmatpush1.msra.mxu0 0.0
    %82 = vmatprep.subr.mxu0 0.0
    %83 = vmatpush1.msra.mxu0 0.0
    %84 = vmatprep.subr.mxu0 0.0
    %85 = vmatpush1.msra.mxu0 0.0
    %86 = vmatprep.subr.mxu0 0.0
    %87 = vmatpush1.msra.mxu0 0.0
    %88 = vmatprep.subr.mxu0 0.0
    %89 = vmatpush1.msra.mxu0 0.0
    %90 = vmatprep.subr.mxu0 0.0
    %91 = vmatpush1.msra.mxu0 0.0
    %92 = vmatprep.subr.mxu0 0.0
    %93 = vmatpush1.msra.mxu0 0.0
    %94 = vmatprep.subr.mxu0 0.0
    %95 = vmatpush1.msra.mxu0 0.0
    %96 = vmatprep.subr.mxu0 0.0
    %97 = vmatpush1.msra.mxu0 0.0
    %98 = vmatprep.subr.mxu0 0.0
    %99 = vmatpush1.msra.mxu0 0.0
    %100 = vmatprep.subr.mxu0 0.0
    %101 = vmatpush1.msra.mxu0 0.0
    %102 = vmatprep.subr.mxu0 0.0
    %103 = vmatpush1.msra.mxu0 0.0
    %104 = vmatprep.subr.mxu0 0.0
    %105 = vmatpush1.msra.mxu0 0.0
    %106 = vmatprep.subr.mxu0 0.0
    %107 = vmatpush1.msra.mxu0 0.0
    %108 = vmatprep.subr.mxu0 0.0
    %109 = vmatpush1.msra.mxu0 0.0
    %110 = vmatprep.subr.mxu0 0.0
    %111 = vmatpush1.msra.mxu0 0.0
    %112 = vmatprep.subr.mxu0 0.0
    %113 = vmatpush1.msra.mxu0 0.0
    %114 = vmatprep.subr.mxu0 0.0
    %115 = vmatpush1.msra.mxu0 0.0
    %116 = vmatprep.subr.mxu0 0.0
    %117 = vmatpush1.msra.mxu0 0.0
    %118 = vmatprep.subr.mxu0 0.0
    %119 = vmatpush1.msra.mxu0 0.0
    %120 = vmatprep.subr.mxu0 0.0
    %121 = vmatpush1.msra.mxu0 0.0
    %122 = vmatprep.subr.mxu0 0.0
    %123 = vmatpush1.msra.mxu0 0.0
    %124 = vmatprep.mubr.f32.mxu0 0.0
    %125 = vmatmul.mubr.f32.gmra.mrb[0].mxu0 %v51
    %v126 = vpop.f32.mrb[0].mxu0
    %v127 = vadd.f32 0.0, %v126
    %v128 = vpop.f32.mrb[0].mxu0
    %v129 = vadd.f32 0.0, %v128
    %130 = vdwg.mxu0
    %v133 = vcombine.low %v127, %v129
    %135 = vst [vmem:[#allocation7] sm:$0xff] %v133
    // Predicated region
    $region18: #{tpu_custom_call.1} parent=1 // pred_check
      _
    $region19: #{tpu_custom_call.1} parent=1 // pred_check_branch
      %137 = sbr.rel (0) target = $region21
    $region20: #{tpu_custom_call.1} parent=1 // pred_region
      %s139 = ssub.s32 128, 128
      %140 = vsyncadd [#allocation4], %s139
      %s142 = sshll.u32 [#allocation7], 4
      %s143 = int_to_ptr.vmem [resolvable:$true] %s142
      %145 = dma.vmem_to_hbm [thread:$0]  %s143, 128, %s2, [#allocation4]
    $region21: #{tpu_custom_call.1} parent=1 // pred_fallthru
      _
    // Predicated region
    $region22: #{tpu_custom_call.1} parent=1 // pred_check
      _
    $region23: #{tpu_custom_call.1} parent=1 // pred_check_branch
      %147 = sbr.rel (0) target = $region25
    $region24: #{tpu_custom_call.1} parent=1 // pred_region
      %148 = dma.done [#allocation4], 128
    $region25: #{tpu_custom_call.1} parent=1 // pred_fallthru
      _
    %149 = vsyncpa [#allocation3], 1
    %150 = vsyncpa [#allocation6], 1
    %151 = vsyncpa [#allocation4], 1

</llo_original>
